<compile_context>
chip_gen: v6e
topology: v6e:2x2x1
jax: 0.10.0
libtpu: 0.0.40
codegen_flags: <defaults>
</compile_context>

<pallas_src>
import functools

import jax
import jax.numpy as jnp
from jax import lax
from jax.experimental import pallas as pl
from jax.experimental.pallas import tpu as pltpu


def _cfm_kernel(x_ref, w1_ref, w2_ref, o_ref, *, nb, img_h, img_w):
    # x_ref : (nb, Cin, L)     L = H*W, row-major flattened images (unpadded)
    # w1_ref: (Chid, 9*Cin)    3x3 weights, tap-major then cin (bf16)
    # w2_ref: (Cout, Chid)     1x1 weights (bf16)
    # o_ref : (nb, Cout, L)    dense output, no junk columns
    cin = x_ref.shape[1]
    L = img_h * img_w
    nbl = nb * L

    # Fold the per-step images along lanes: (nb, Cin, L) -> (Cin, nb*L).
    if nb == 1:
        x_cat = x_ref[0]
    else:
        x_cat = jnp.concatenate([x_ref[b] for b in range(nb)], axis=1)

    # Per-lane pixel coordinates (identical for every folded image since L
    # divides nb*L): these masks implement the conv3x3 zero padding in-kernel
    # and also kill any roll wrap-around / cross-image leakage.
    lane = lax.broadcasted_iota(jnp.int32, (cin, nbl), 1)
    li = lane % L                    # flat pixel index inside one image
    xc = lane % img_w                # column index
    col_keep = {0: xc != 0, 1: None, 2: xc != (img_w - 1)}
    row_keep = {0: li >= img_w, 1: None, 2: li < (L - img_w)}

    # In-register im2col: each tap (ky, kx) is a static lane roll by
    # d = (ky-1)*W + (kx-1) plus its boundary mask.
    pieces = []
    for ky in range(3):
        for kx in range(3):
            d = (ky - 1) * img_w + (kx - 1)
            p = x_cat if d == 0 else pltpu.roll(x_cat, (-d) % nbl, 1)
            keep = row_keep[ky]
            ck = col_keep[kx]
            if keep is None:
                keep = ck
            elif ck is not None:
                keep = jnp.logical_and(keep, ck)
            if keep is not None:
                p = jnp.where(keep, p, 0.0)
            pieces.append(p.astype(jnp.bfloat16))
    # (9*Cin, nb*L) bf16 operand; lane-dense (nb*L is a multiple of 128 here).
    # NOTE: if a bundle dump ever shows vreg spills at larger nb*H*W, stage
    # this through a pltpu.VMEM scratch instead of a value-level concat.
    stacked = jnp.concatenate(pieces, axis=0)

    # conv3x3 as one K=9*Cin MXU matmul, f32 accumulation.
    h = jnp.dot(w1_ref[...], stacked, preferred_element_type=jnp.float32)

    # Exact GELU (torch.nn.GELU default), in f32: 0.5*x*(1+erf(x/sqrt(2))).
    h = 0.5 * h * (1.0 + lax.erf(h * jnp.float32(0.7071067811865476)))

    # conv1x1 as a second matmul; result stays (Cout, nb*L) -> lane-dense.
    out = jnp.dot(w2_ref[...], h.astype(jnp.bfloat16),
                  preferred_element_type=jnp.float32)

    for b in range(nb):
        o_ref[b] = out[:, b * L:(b + 1) * L].astype(o_ref.dtype)


def _images_per_step(n):
    """Images folded along lanes per grid step.

    Keep >= 2 parallel grid steps so both v7x TensorCores get work; fold the
    rest of the batch along lanes so each step is fat (fewest, fattest steps
    for the single-TC v5e/v6e)."""
    if n < 2 or n % 2 != 0:
        return 1
    nb = n // 2
    while nb > 8:   # keep the per-step im2col VMEM footprint modest
        nb //= 2
    return nb


@jax.jit
def cfm_forward(x_nchw, w1_oihw, w2_oihw):
    """x: (N, Cin, H, W); w1: (Chid, Cin, 3, 3); w2: (Cout, Chid, 1, 1)."""
    N, Cin, H, W = x_nchw.shape
    Chid = w1_oihw.shape[0]
    Cout = w2_oihw.shape[0]
    L = H * W
    nb = _images_per_step(N)
    assert N % nb == 0

    # Wrapper ops are metadata-only reshapes (no pad / slice / transpose HBM
    # passes on activations) plus tiny weight prep.
    x_flat = x_nchw.reshape(N, Cin, L)
    w1t = jnp.transpose(w1_oihw, (0, 2, 3, 1)).reshape(Chid, 9 * Cin)
    w1t = w1t.astype(jnp.bfloat16)
    w2t = w2_oihw.reshape(Cout, Chid).astype(jnp.bfloat16)

    kernel = functools.partial(_cfm_kernel, nb=nb, img_h=H, img_w=W)

    out_flat = pl.pallas_call(
        kernel,
        out_shape=jax.ShapeDtypeStruct((N, Cout, L), x_nchw.dtype),
        grid_spec=pltpu.PrefetchScalarGridSpec(
            num_scalar_prefetch=0,
            grid=(N // nb,),
            in_specs=[
                pl.BlockSpec((nb, Cin, L), lambda n: (n, 0, 0)),
                pl.BlockSpec((Chid, 9 * Cin), lambda n: (0, 0)),
                pl.BlockSpec((Cout, Chid), lambda n: (0, 0)),
            ],
            out_specs=pl.BlockSpec((nb, Cout, L), lambda n: (n, 0, 0)),
        ),
        compiler_params=pltpu.CompilerParams(
            dimension_semantics=("parallel",),
        ),
        # NOTE: for much larger H*W, add an H-row grid axis with a 2-row halo
        # and set vmem_limit_bytes (whole-image blocks scale as H*W; v7x only
        # has 64 MiB VMEM).
    )(x_flat, w1t, w2t)

    # Free metadata reshape back to NCHW (output is already dense, no slice).
    return out_flat.reshape(N, Cout, H, W)


def cfm_reference(x_nchw, w1_oihw, w2_oihw):
    """Pure-JAX reference with torch conv semantics, for correctness checking."""
    y = lax.conv_general_dilated(
        x_nchw, w1_oihw, window_strides=(1, 1), padding=((1, 1), (1, 1)),
        dimension_numbers=("NCHW", "OIHW", "NCHW"),
    )
    y = 0.5 * y * (1.0 + lax.erf(y * jnp.float32(0.7071067811865476)))
    return lax.conv_general_dilated(
        y, w2_oihw, window_strides=(1, 1), padding=((0, 0), (0, 0)),
        dimension_numbers=("NCHW", "OIHW", "NCHW"),
    )


if __name__ == "__main__":
    # Module config: dim=8, ffn_scale=2.0 -> hidden_dim=16, idx=3 (conv2
    # branch; idx >= 6 uses an identically-shaped conv5 -> same math).
    dim = 8
    ffn_scale = 2.0
    hidden_dim = int(dim * ffn_scale)

    N, H, W = 2, 16, 16

    key = jax.random.PRNGKey(0)
    kx, kw1, kw2 = jax.random.split(key, 3)

    x = jax.random.normal(kx, (N, dim, H, W), dtype=jnp.float32)
    # Deterministic synthetic weights in torch layouts (OIHW), kaiming-ish.
    w1 = jax.random.normal(kw1, (hidden_dim, dim, 3, 3), dtype=jnp.float32) * 0.1
    w2 = jax.random.normal(kw2, (dim, hidden_dim, 1, 1), dtype=jnp.float32) * 0.1

    # Primary config: N=2 -> 1 image per step, grid=(2,) "parallel".
    out = jax.block_until_ready(cfm_forward(x, w1, w2))
    ref = jax.block_until_ready(cfm_reference(x, w1, w2))
    assert out.shape == (N, dim, H, W)
    # bf16 MXU inputs (f32 accumulation) -> slightly loosened tolerance.
    assert jnp.allclose(out, ref, rtol=2e-2, atol=2e-2), "mismatch vs reference"

    # Also exercise the lane-folded batch path: N=4 -> 2 images per grid step.
    x4 = jax.random.normal(kx, (4, dim, H, W), dtype=jnp.float32)
    out4 = jax.block_until_ready(cfm_forward(x4, w1, w2))
    ref4 = jax.block_until_ready(cfm_reference(x4, w1, w2))
    assert jnp.allclose(out4, ref4, rtol=2e-2, atol=2e-2), "mismatch (folded batch)"

    print("KERNEL_OK")
</pallas_src>

<mosaic_0001>
module attributes {stable_mosaic.version = 11 : i64} {
  func.func @_cfm_kernel(%arg0: i32, %arg1: memref<1x8x256xf32, #tpu.memory_space<vmem>>, %arg2: memref<16x72xbf16, #tpu.memory_space<vmem>>, %arg3: memref<8x16xbf16, #tpu.memory_space<vmem>>, %arg4: memref<1x8x256xf32, #tpu.memory_space<vmem>>) attributes {dimension_semantics = [#tpu.dimension_semantics<parallel>], iteration_bounds = array<i64: 2>, scalar_prefetch = 0 : i64, scratch_operands = 0 : i64, tpu.core_type = #tpu.core_type<tc>, window_params = [{transform_indices = @transform_0, window_bounds = array<i64: 1, 8, 256>}, {pipeline_mode = #tpu.pipeline_mode<synchronous>, transform_indices = @transform_1, window_bounds = array<i64: 16, 72>}, {pipeline_mode = #tpu.pipeline_mode<synchronous>, transform_indices = @transform_2, window_bounds = array<i64: 8, 16>}, {transform_indices = @transform_3, window_bounds = array<i64: 1, 8, 256>}]} {
    %c0 = arith.constant 0 : index
    %c0_0 = arith.constant 0 : index
    %c0_1 = arith.constant 0 : index
    %0 = vector.load %arg1[%c0, %c0_0, %c0_1] : memref<1x8x256xf32, #tpu.memory_space<vmem>>, vector<1x8x256xf32>
    %1 = vector.shape_cast %0 : vector<1x8x256xf32> to vector<8x256xf32>
    %2 = tpu.iota {dimensions = array<i32: 1>} : vector<8x256xi32>
    %c256_i32 = arith.constant 256 : i32
    %c0_i32 = arith.constant 0 : i32
    %3 = arith.cmpi eq, %c256_i32, %c0_i32 : i32
    %c1_i32 = arith.constant 1 : i32
    %4 = arith.select %3, %c1_i32, %c256_i32 : i32
    %5 = vector.broadcast %4 : i32 to vector<8x256xi32>
    %6 = arith.remsi %2, %5 : vector<8x256xi32>
    %c0_i32_2 = arith.constant 0 : i32
    %7 = vector.broadcast %c0_i32_2 : i32 to vector<8x256xi32>
    %8 = arith.cmpi ne, %6, %7 : vector<8x256xi32>
    %c0_i32_3 = arith.constant 0 : i32
    %9 = vector.broadcast %c0_i32_3 : i32 to vector<8x256xi32>
    %10 = arith.cmpi slt, %6, %9 : vector<8x256xi32>
    %c0_i32_4 = arith.constant 0 : i32
    %11 = arith.cmpi slt, %4, %c0_i32_4 : i32
    %12 = vector.broadcast %11 : i1 to vector<8x256xi1>
    %13 = vector.broadcast %12 : vector<8x256xi1> to vector<8x256xi1>
    %14 = arith.xori %10, %13 : vector<8x256xi1>
    %15 = arith.andi %14, %8 : vector<8x256xi1>
    %16 = vector.broadcast %4 : i32 to vector<8x256xi32>
    %17 = arith.addi %6, %16 : vector<8x256xi32>
    %18 = arith.select %15, %17, %6 : vector<8x256xi1>, vector<8x256xi32>
    %c16_i32 = arith.constant 16 : i32
    %c0_i32_5 = arith.constant 0 : i32
    %19 = arith.cmpi eq, %c16_i32, %c0_i32_5 : i32
    %c1_i32_6 = arith.constant 1 : i32
    %20 = arith.select %19, %c1_i32_6, %c16_i32 : i32
    %21 = vector.broadcast %20 : i32 to vector<8x256xi32>
    %22 = arith.remsi %2, %21 : vector<8x256xi32>
    %c0_i32_7 = arith.constant 0 : i32
    %23 = vector.broadcast %c0_i32_7 : i32 to vector<8x256xi32>
    %24 = arith.cmpi ne, %22, %23 : vector<8x256xi32>
    %c0_i32_8 = arith.constant 0 : i32
    %25 = vector.broadcast %c0_i32_8 : i32 to vector<8x256xi32>
    %26 = arith.cmpi slt, %22, %25 : vector<8x256xi32>
    %c0_i32_9 = arith.constant 0 : i32
    %27 = arith.cmpi slt, %20, %c0_i32_9 : i32
    %28 = vector.broadcast %27 : i1 to vector<8x256xi1>
    %29 = vector.broadcast %28 : vector<8x256xi1> to vector<8x256xi1>
    %30 = arith.xori %26, %29 : vector<8x256xi1>
    %31 = arith.andi %30, %24 : vector<8x256xi1>
    %32 = vector.broadcast %20 : i32 to vector<8x256xi32>
    %33 = arith.addi %22, %32 : vector<8x256xi32>
    %34 = arith.select %31, %33, %22 : vector<8x256xi1>, vector<8x256xi32>
    %c0_i32_10 = arith.constant 0 : i32
    %35 = vector.broadcast %c0_i32_10 : i32 to vector<8x256xi32>
    %36 = arith.cmpi ne, %34, %35 : vector<8x256xi32>
    %c15_i32 = arith.constant 15 : i32
    %37 = vector.broadcast %c15_i32 : i32 to vector<8x256xi32>
    %38 = arith.cmpi ne, %34, %37 : vector<8x256xi32>
    %c16_i32_11 = arith.constant 16 : i32
    %39 = vector.broadcast %c16_i32_11 : i32 to vector<8x256xi32>
    %40 = arith.cmpi sge, %18, %39 : vector<8x256xi32>
    %c240_i32 = arith.constant 240 : i32
    %41 = vector.broadcast %c240_i32 : i32 to vector<8x256xi32>
    %42 = arith.cmpi slt, %18, %41 : vector<8x256xi32>
    %c17_i32 = arith.constant 17 : i32
    %43 = tpu.dynamic_rotate %1 by %c17_i32 dim 1 : vector<8x256xf32>, i32 -> vector<8x256xf32>
    %44 = arith.andi %40, %36 : vector<8x256xi1>
    %cst = arith.constant 0.000000e+00 : f32
    %45 = vector.broadcast %cst : f32 to vector<8x256xf32>
    %46 = arith.select %44, %43, %45 : vector<8x256xi1>, vector<8x256xf32>
    %47 = arith.truncf %46 : vector<8x256xf32> to vector<8x256xbf16>
    %c16_i32_12 = arith.constant 16 : i32
    %48 = tpu.dynamic_rotate %1 by %c16_i32_12 dim 1 : vector<8x256xf32>, i32 -> vector<8x256xf32>
    %cst_13 = arith.constant 0.000000e+00 : f32
    %49 = vector.broadcast %cst_13 : f32 to vector<8x256xf32>
    %50 = arith.select %40, %48, %49 : vector<8x256xi1>, vector<8x256xf32>
    %51 = arith.truncf %50 : vector<8x256xf32> to vector<8x256xbf16>
    %c15_i32_14 = arith.constant 15 : i32
    %52 = tpu.dynamic_rotate %1 by %c15_i32_14 dim 1 : vector<8x256xf32>, i32 -> vector<8x256xf32>
    %53 = arith.andi %40, %38 : vector<8x256xi1>
    %cst_15 = arith.constant 0.000000e+00 : f32
    %54 = vector.broadcast %cst_15 : f32 to vector<8x256xf32>
    %55 = arith.select %53, %52, %54 : vector<8x256xi1>, vector<8x256xf32>
    %56 = arith.truncf %55 : vector<8x256xf32> to vector<8x256xbf16>
    %c1_i32_16 = arith.constant 1 : i32
    %57 = tpu.dynamic_rotate %1 by %c1_i32_16 dim 1 : vector<8x256xf32>, i32 -> vector<8x256xf32>
    %cst_17 = arith.constant 0.000000e+00 : f32
    %58 = vector.broadcast %cst_17 : f32 to vector<8x256xf32>
    %59 = arith.select %36, %57, %58 : vector<8x256xi1>, vector<8x256xf32>
    %60 = arith.truncf %59 : vector<8x256xf32> to vector<8x256xbf16>
    %61 = arith.truncf %1 : vector<8x256xf32> to vector<8x256xbf16>
    %c255_i32 = arith.constant 255 : i32
    %62 = tpu.dynamic_rotate %1 by %c255_i32 dim 1 : vector<8x256xf32>, i32 -> vector<8x256xf32>
    %cst_18 = arith.constant 0.000000e+00 : f32
    %63 = vector.broadcast %cst_18 : f32 to vector<8x256xf32>
    %64 = arith.select %38, %62, %63 : vector<8x256xi1>, vector<8x256xf32>
    %65 = arith.truncf %64 : vector<8x256xf32> to vector<8x256xbf16>
    %c241_i32 = arith.constant 241 : i32
    %66 = tpu.dynamic_rotate %1 by %c241_i32 dim 1 : vector<8x256xf32>, i32 -> vector<8x256xf32>
    %67 = arith.andi %42, %36 : vector<8x256xi1>
    %cst_19 = arith.constant 0.000000e+00 : f32
    %68 = vector.broadcast %cst_19 : f32 to vector<8x256xf32>
    %69 = arith.select %67, %66, %68 : vector<8x256xi1>, vector<8x256xf32>
    %70 = arith.truncf %69 : vector<8x256xf32> to vector<8x256xbf16>
    %c240_i32_20 = arith.constant 240 : i32
    %71 = tpu.dynamic_rotate %1 by %c240_i32_20 dim 1 : vector<8x256xf32>, i32 -> vector<8x256xf32>
    %cst_21 = arith.constant 0.000000e+00 : f32
    %72 = vector.broadcast %cst_21 : f32 to vector<8x256xf32>
    %73 = arith.select %42, %71, %72 : vector<8x256xi1>, vector<8x256xf32>
    %74 = arith.truncf %73 : vector<8x256xf32> to vector<8x256xbf16>
    %c239_i32 = arith.constant 239 : i32
    %75 = tpu.dynamic_rotate %1 by %c239_i32 dim 1 : vector<8x256xf32>, i32 -> vector<8x256xf32>
    %76 = arith.andi %42, %38 : vector<8x256xi1>
    %cst_22 = arith.constant 0.000000e+00 : f32
    %77 = vector.broadcast %cst_22 : f32 to vector<8x256xf32>
    %78 = arith.select %76, %75, %77 : vector<8x256xi1>, vector<8x256xf32>
    %79 = arith.truncf %78 : vector<8x256xf32> to vector<8x256xbf16>
    %80 = tpu.concatenate %47, %51, %56, %60, %61, %65, %70, %74, %79 in 0 : vector<8x256xbf16>, vector<8x256xbf16>, vector<8x256xbf16>, vector<8x256xbf16>, vector<8x256xbf16>, vector<8x256xbf16>, vector<8x256xbf16>, vector<8x256xbf16>, vector<8x256xbf16> -> vector<72x256xbf16>
    %c0_23 = arith.constant 0 : index
    %c0_24 = arith.constant 0 : index
    %81 = vector.load %arg2[%c0_23, %c0_24] : memref<16x72xbf16, #tpu.memory_space<vmem>>, vector<16x72xbf16>
    %cst_25 = arith.constant dense<0.000000e+00> : vector<16x256xf32>
    %82 = tpu.matmul %81, %80, %cst_25 {dimension_numbers = #tpu.dot_dimension_numbers<[1], [0], [0], [1], [0, 0, 1, 1], [], []>} : vector<16x72xbf16>, vector<72x256xbf16>, vector<16x256xf32> -> vector<16x256xf32>
    %cst_26 = arith.constant 5.000000e-01 : f32
    %83 = vector.broadcast %cst_26 : f32 to vector<16x256xf32>
    %84 = arith.mulf %83, %82 : vector<16x256xf32>
    %cst_27 = arith.constant 0.707106769 : f32
    %85 = vector.broadcast %cst_27 : f32 to vector<16x256xf32>
    %86 = arith.mulf %82, %85 : vector<16x256xf32>
    %87 = math.erf %86 : vector<16x256xf32>
    %cst_28 = arith.constant 1.000000e+00 : f32
    %88 = vector.broadcast %cst_28 : f32 to vector<16x256xf32>
    %89 = arith.addf %88, %87 : vector<16x256xf32>
    %90 = arith.mulf %84, %89 : vector<16x256xf32>
    %c0_29 = arith.constant 0 : index
    %c0_30 = arith.constant 0 : index
    %91 = vector.load %arg3[%c0_29, %c0_30] : memref<8x16xbf16, #tpu.memory_space<vmem>>, vector<8x16xbf16>
    %92 = arith.truncf %90 : vector<16x256xf32> to vector<16x256xbf16>
    %cst_31 = arith.constant dense<0.000000e+00> : vector<8x256xf32>
    %93 = tpu.matmul %91, %92, %cst_31 {dimension_numbers = #tpu.dot_dimension_numbers<[1], [0], [0], [1], [0, 0, 1, 1], [], []>} : vector<8x16xbf16>, vector<16x256xbf16>, vector<8x256xf32> -> vector<8x256xf32>
    %c0_32 = arith.constant 0 : index
    %c0_33 = arith.constant 0 : index
    %c0_34 = arith.constant 0 : index
    %94 = vector.load %arg4[%c0_32, %c0_33, %c0_34] : memref<1x8x256xf32, #tpu.memory_space<vmem>>, vector<1x8x256xf32>
    %95 = vector.shape_cast %94 : vector<1x8x256xf32> to vector<8x256xf32>
    %96 = vector.shape_cast %93 : vector<8x256xf32> to vector<1x8x256xf32>
    tpu.vector_store %arg4[%c0_32, %c0_33, %c0_34], %96 {strides = array<i32>} : memref<1x8x256xf32, #tpu.memory_space<vmem>>, vector<1x8x256xf32>,
    return
  }
  func.func @transform_0(%arg0: i32) -> (i32, i32, i32) {
    %c0_i32 = arith.constant 0 : i32
    %c0_i32_0 = arith.constant 0 : i32
    %c0_i32_1 = arith.constant 0 : i32
    return %arg0, %c0_i32, %c0_i32_0 : i32, i32, i32
  }
  func.func @transform_1(%arg0: i32) -> (i32, i32) {
    %c0_i32 = arith.constant 0 : i32
    %c0_i32_0 = arith.constant 0 : i32
    %c0_i32_1 = arith.constant 0 : i32
    return %c0_i32, %c0_i32_0 : i32, i32
  }
  func.func @transform_2(%arg0: i32) -> (i32, i32) {
    %c0_i32 = arith.constant 0 : i32
    %c0_i32_0 = arith.constant 0 : i32
    %c0_i32_1 = arith.constant 0 : i32
    return %c0_i32, %c0_i32_0 : i32, i32
  }
  func.func @transform_3(%arg0: i32) -> (i32, i32, i32) {
    %c0_i32 = arith.constant 0 : i32
    %c0_i32_0 = arith.constant 0 : i32
    %c0_i32_1 = arith.constant 0 : i32
    return %arg0, %c0_i32, %c0_i32_0 : i32, i32, i32
  }
}

</mosaic_0001>

<llo_original>
// kernel: cfm_forward.1
$region0: #{cfm_forward.1}
  #allocation0 [shape = 'u32[]', space=smem, size = 0x4, offset = 0x4, fixed_abs, tag = 'smem constant byte address 0x4 - core index']
  #allocation1 [shape = 'u32[144,128]{1,0:T(1,128)}', space=vmem, size = 0x12000, scoped, tag = 'internal scratch']
  %s0 = inlined_call_operand.vmem [shape: f32[2,8,256], index: 0, kind: input, shape index: {}]
  %s1 = inlined_call_operand.vmem [shape: bf16[16,72], index: 1, kind: input, shape index: {}]
  %s2 = inlined_call_operand.vmem [shape: bf16[8,16], index: 2, kind: input, shape index: {}]
  %s3 = inlined_call_operand.vmem [shape: f32[2,8,256], index: 3, kind: output, shape index: {}]
  %s4 = sld [smem:[#allocation0]]
  $region45: #{cfm_forward.1} parent=0
    _
  %s6 = ssub.s32 1, %s4
  %s7 = scalar_select 0, %s6, %s4
  loop: start=0, step=1, limit=4
  $region2: #{cfm_forward.1} parent=0 // loop_pre_header
    _
  $region3: #{cfm_forward.1} parent=0 // loop_header
    %s9 = sphi 0, %s13
    %p10 = scmp.ge.s32.totalorder %s9, 4
    %s19 = sphi 0, %s21
    %s22 = sphi 0, %s19
    %s23 = sphi 0, %s22
    %s39 = sphi 0, %s23
    %s43 = sphi 0, %s43
    %s45 = sphi 0, %s43
    %s46 = sphi 0, %s45
    %s60 = sphi 0, %s46
    %s64 = sphi 0, %s64
    %s66 = sphi 0, %s64
    %s67 = sphi 0, %s66
    %s81 = sphi 0, %s67
    %s87 = sphi 0, %s89
    %s90 = sphi 0, %s87
    %s91 = sphi 0, %s90
    %s107 = sphi 0, %s91
  $region4: #{cfm_forward.1} parent=0 // loop_header_branch
    %12 = sbr.rel (%p10) target = $region8
  $region5: #{cfm_forward.1} parent=0 // loop_body
    %s14 = ssub.s32 %s9, 1
    %s15 = ssub.s32 %s9, 2
    %s16 = sadd.s32 %s9, 1
    %s17 = ssub.s32 %s9, %s16
    %p18 = scmp.eq.s32.totalorder %s17, 0
    %s20 = sadd.s32 %s19, 1
    %s21 = scalar_select %p18, %s19, %s20
    %p24 = pneg %p18
    %p25 = scmp.eq.s32.totalorder %s9, 1
    %p26 = por %p24, %p25
    %p27 = scmp.ne.s32.totalorder %s19, %s22
    %p28 = scmp.eq.s32.totalorder %s9, 0
    %p29 = por %p27, %p28
    %p30 = scmp.ne.s32.totalorder %s19, %s22
    %p31 = scmp.eq.s32.totalorder %s14, 1
    %p32 = por %p30, %p31
    %p33 = scmp.ne.s32.totalorder %s22, %s23
    %p34 = scmp.eq.s32.totalorder %s14, 0
    %p35 = por %p33, %p34
    %p36 = scmp.ne.s32.totalorder %s22, %s23
    %p37 = scmp.eq.s32.totalorder %s15, 1
    %p38 = por %p36, %p37
    %p40 = scmp.ne.s32.totalorder %s23, %s39
    %p41 = scmp.eq.s32.totalorder %s15, 0
    %p42 = por %p40, %p41
    %s44 = sadd.s32 %s43, 1
    %p47 = scmp.eq.s32.totalorder %s9, 1
    %p48 = scmp.ne.s32.totalorder %s43, %s45
    %p49 = scmp.eq.s32.totalorder %s9, 0
    %p50 = por %p48, %p49
    %p51 = scmp.ne.s32.totalorder %s43, %s45
    %p52 = scmp.eq.s32.totalorder %s14, 1
    %p53 = por %p51, %p52
    %p54 = scmp.ne.s32.totalorder %s45, %s46
    %p55 = scmp.eq.s32.totalorder %s14, 0
    %p56 = por %p54, %p55
    %p57 = scmp.ne.s32.totalorder %s45, %s46
    %p58 = scmp.eq.s32.totalorder %s15, 1
    %p59 = por %p57, %p58
    %p61 = scmp.ne.s32.totalorder %s46, %s60
    %p62 = scmp.eq.s32.totalorder %s15, 0
    %p63 = por %p61, %p62
    %s65 = sadd.s32 %s64, 1
    %p68 = scmp.eq.s32.totalorder %s9, 1
    %p69 = scmp.ne.s32.totalorder %s64, %s66
    %p70 = scmp.eq.s32.totalorder %s9, 0
    %p71 = por %p69, %p70
    %p72 = scmp.ne.s32.totalorder %s64, %s66
    %p73 = scmp.eq.s32.totalorder %s14, 1
    %p74 = por %p72, %p73
    %p75 = scmp.ne.s32.totalorder %s66, %s67
    %p76 = scmp.eq.s32.totalorder %s14, 0
    %p77 = por %p75, %p76
    %p78 = scmp.ne.s32.totalorder %s66, %s67
    %p79 = scmp.eq.s32.totalorder %s15, 1
    %p80 = por %p78, %p79
    %p82 = scmp.ne.s32.totalorder %s67, %s81
    %p83 = scmp.eq.s32.totalorder %s15, 0
    %p84 = por %p82, %p83
    %s85 = ssub.s32 %s9, %s16
    %p86 = scmp.eq.s32.totalorder %s85, 0
    %s88 = sadd.s32 %s87, 1
    %s89 = scalar_select %p86, %s87, %s88
    %p92 = pneg %p86
    %p93 = scmp.eq.s32.totalorder %s9, 1
    %p94 = por %p92, %p93
    %p95 = scmp.ne.s32.totalorder %s87, %s90
    %p96 = scmp.eq.s32.totalorder %s9, 0
    %p97 = por %p95, %p96
    %p98 = scmp.ne.s32.totalorder %s87, %s90
    %p99 = scmp.eq.s32.totalorder %s14, 1
    %p100 = por %p98, %p99
    %p101 = scmp.ne.s32.totalorder %s90, %s91
    %p102 = scmp.eq.s32.totalorder %s14, 0
    %p103 = por %p101, %p102
    %p104 = scmp.ne.s32.totalorder %s90, %s91
    %p105 = scmp.eq.s32.totalorder %s15, 1
    %p106 = por %p104, %p105
    %p108 = scmp.ne.s32.totalorder %s91, %s107
    %p109 = scmp.eq.s32.totalorder %s15, 0
    %p110 = por %p108, %p109
    %p111 = scmp.le.s32.totalorder 1, %s9
    %p112 = scmp.lt.s32.totalorder %s9, 3
    %p113 = pnand %p111, %p112
    %p114 = pneg %p113
    // Predicated region
    $region9: #{cfm_forward.1} parent=5 // pred_check
      _
    $region10: #{cfm_forward.1} parent=5 // pred_check_branch
      %116 = sbr.rel (%p113) target = $region12
    $region11: #{cfm_forward.1} parent=5 // pred_region
      %s117 = ssub.s32 %s9, 1
      // Predicated region
      $region13: #{cfm_forward.1} parent=11 // pred_check
        %p118 = pneg %p56
      $region14: #{cfm_forward.1} parent=11 // pred_check_branch
        %120 = sbr.rel (%p118) target = $region16
      $region15: #{cfm_forward.1} parent=11 // pred_region
        _
      $region16: #{cfm_forward.1} parent=11 // pred_fallthru
        _
      // Predicated region
      $region17: #{cfm_forward.1} parent=11 // pred_check
        %p121 = pneg %p77
      $region18: #{cfm_forward.1} parent=11 // pred_check_branch
        %123 = sbr.rel (%p121) target = $region20
      $region19: #{cfm_forward.1} parent=11 // pred_region
        _
      $region20: #{cfm_forward.1} parent=11 // pred_fallthru
        _
    $region12: #{cfm_forward.1} parent=5 // pred_fallthru
      _
    %p124 = scmp.lt.s32.totalorder %s9, 2
    // Predicated region
    $region21: #{cfm_forward.1} parent=5 // pred_check
      %p125 = pneg %p124
    $region22: #{cfm_forward.1} parent=5 // pred_check_branch
      %127 = sbr.rel (%p125) target = $region24
    $region23: #{cfm_forward.1} parent=5 // pred_region
      // Predicated region
      $region25: #{cfm_forward.1} parent=23 // pred_check
        %p128 = pneg %p29
      $region26: #{cfm_forward.1} parent=23 // pred_check_branch
        %130 = sbr.rel (%p128) target = $region28
      $region27: #{cfm_forward.1} parent=23 // pred_region
        %p131 = scmp.lt.s32.totalorder %s9, 1
        %s132 = scalar_select %p131, %s9, 1
        %s133 = smul.addr %s132, 2
        %s134 = smul.addr %s133, 8
        %s135 = scalar_lea.vmem %s0, %s134
      $region28: #{cfm_forward.1} parent=23 // pred_fallthru
        _
    $region24: #{cfm_forward.1} parent=5 // pred_fallthru
      _
    %p136 = scmp.le.s32.totalorder 1, %s9
    %p137 = scmp.lt.s32.totalorder %s9, 3
    %p138 = pnand %p136, %p137
    %p139 = pneg %p138
    // Predicated region
    $region29: #{cfm_forward.1} parent=5 // pred_check
      _
    $region30: #{cfm_forward.1} parent=5 // pred_check_branch
      %141 = sbr.rel (%p138) target = $region32
    $region31: #{cfm_forward.1} parent=5 // pred_region
      %s142 = ssub.s32 %s9, 1
      %p143 = scmp.lt.s32.totalorder %s14, 1
      %s144 = scalar_select %p143, %s14, 1
      %s145 = smul.addr %s144, 2
      %s146 = smul.addr %s145, 8
      %s147 = scalar_lea.vmem %s0, %s146
      %p148 = pneg %p35
      %p149 = pneg %p32
      %p150 = pneg %p56
      %p151 = pneg %p53
      %p152 = pneg %p77
      %p153 = pneg %p74
      %p154 = pneg %p103
      %p155 = pneg %p100
      %p156 = scmp.lt.s32.totalorder %s14, 1
      %s157 = scalar_select %p156, %s14, 1
      %s158 = smul.addr %s157, 2
      %s159 = smul.addr %s158, 8
      %s160 = scalar_lea.vmem %s3, %s159
      %p161 = scmp.lt.s32.totalorder %s14, 1
      %s162 = scalar_select %p161, %s14, 1
      %s163 = smul.addr %s162, 2
      %s164 = smul.addr %s163, 8
      %s165 = scalar_lea.vmem %s0, %s164
      %p166 = scmp.lt.s32.totalorder %s14, 1
      %s167 = scalar_select %p166, %s14, 1
      %s168 = smul.addr %s167, 2
      %s169 = smul.addr %s168, 8
      %s170 = scalar_lea.vmem %s3, %s169
      %v172 = vld [vmem:[%s165] sm:$0xff]
      %v173 = vld [vmem:[%s165 + $0x8] sm:$0xff]
      %v174 = vlaneseq
      %v175 = vand.u32 %v174, 127
      %v176 = vadd.s32 %v175, 128
      %vm177 = vcmp.lt.s32.totalorder %v175, 0
      %v178 = vsub.s32 0, %v175
      %v179 = vsel %vm177, %v178, %v175
      %v180 = vshrl.u32 %v179, 8
      %v181 = vand.u32 %v179, 255
      %v182 = vsub.s32 0, %v181
      %v183 = vsel %vm177, %v182, %v181
      %vm184 = vcmp.lt.s32.totalorder %v176, 0
      %v185 = vsub.s32 0, %v176
      %v186 = vsel %vm184, %v185, %v176
      %v187 = vshrl.u32 %v186, 8
      %v188 = vand.u32 %v186, 255
      %v189 = vsub.s32 0, %v188
      %v190 = vsel %vm184, %v189, %v188
      %vm191 = vcmp.ne.s32.totalorder %v183, 0
      %vm192 = vcmp.ne.s32.totalorder %v190, 0
      %vm193 = vcmp.lt.s32.totalorder %v183, 0
      %vm194 = vcmp.lt.s32.totalorder %v190, 0
      %vm195 = vmand %vm193, %vm191
      %vm196 = vmand %vm194, %vm192
      %v197 = vadd.s32 %v183, 256
      %v198 = vadd.s32 %v190, 256
      %v199 = vsel %vm195, %v197, %v183
      %v200 = vsel %vm196, %v198, %v190
      %vm201 = vcmp.lt.s32.totalorder %v175, 0
      %v202 = vsub.s32 0, %v175
      %v203 = vsel %vm201, %v202, %v175
      %v204 = vshrl.u32 %v203, 4
      %v205 = vand.u32 %v203, 15
      %v206 = vsub.s32 0, %v205
      %v207 = vsel %vm201, %v206, %v205
      %vm208 = vcmp.lt.s32.totalorder %v176, 0
      %v209 = vsub.s32 0, %v176
      %v210 = vsel %vm208, %v209, %v176
      %v211 = vshrl.u32 %v210, 4
      %v212 = vand.u32 %v210, 15
      %v213 = vsub.s32 0, %v212
      %v214 = vsel %vm208, %v213, %v212
      %vm215 = vcmp.ne.s32.totalorder %v207, 0
      %vm216 = vcmp.ne.s32.totalorder %v214, 0
      %vm217 = vcmp.lt.s32.totalorder %v207, 0
      %vm218 = vcmp.lt.s32.totalorder %v214, 0
      %vm219 = vmand %vm217, %vm215
      %vm220 = vmand %vm218, %vm216
      %v221 = vadd.s32 %v207, 16
      %v222 = vadd.s32 %v214, 16
      %v223 = vsel %vm219, %v221, %v207
      %v224 = vsel %vm220, %v222, %v214
      %vm225 = vcmp.ne.s32.totalorder %v223, 0
      %vm226 = vcmp.ne.s32.totalorder %v224, 0
      %vm227 = vcmp.ne.s32.totalorder %v223, 15
      %vm228 = vcmp.ne.s32.totalorder %v224, 15
      %vm229 = vcmp.ge.s32.totalorder %v199, 16
      %vm230 = vcmp.ge.s32.totalorder %v200, 16
      %vm231 = vcmp.lt.s32.totalorder %v199, 240
      %vm232 = vcmp.lt.s32.totalorder %v200, 240
      %233 = vrot.lane.b32.xlu0 %v172, 17
      %v234 = vpop.permute.xlu0 %233
      %235 = vrot.lane.b32.xlu0 %v173, 17
      %v236 = vpop.permute.xlu0 %235
      %vm237 = vcmp.lt.s32.totalorder %v175, 17
      %v238 = vsel %vm237, %v234, %v236
      %v239 = vsel %vm237, %v236, %v234
      %vm240 = vmand %vm229, %vm225
      %vm241 = vmand %vm230, %vm226
      %v242 = vsel %vm240, %v239, 0.0
      %v243 = vsel %vm241, %v238, 0.0
      %v244 = vpack.c.bf16 %v242, %v242
      %v245 = vpack.c.bf16 %v243, %v243
      %246 = vrot.lane.b32.xlu0 %v172, 16
      %v247 = vpop.permute.xlu0 %246
      %248 = vrot.lane.b32.xlu0 %v173, 16
      %v249 = vpop.permute.xlu0 %248
      %vm250 = vcmp.lt.s32.totalorder %v175, 16
      %v251 = vsel %vm250, %v247, %v249
      %v252 = vsel %vm250, %v249, %v247
      %v253 = vsel %vm229, %v252, 0.0
      %v254 = vsel %vm230, %v251, 0.0
      %v255 = vpack.c.bf16 %v253, %v253
      %v256 = vpack.c.bf16 %v254, %v254
      %257 = vrot.lane.b32.xlu0 %v172, 15
      %v258 = vpop.permute.xlu0 %257
      %259 = vrot.lane.b32.xlu0 %v173, 15
      %v260 = vpop.permute.xlu0 %259
      %vm261 = vcmp.lt.s32.totalorder %v175, 15
      %v262 = vsel %vm261, %v258, %v260
      %v263 = vsel %vm261, %v260, %v258
      %vm264 = vmand %vm229, %vm227
      %vm265 = vmand %vm230, %vm228
      %v266 = vsel %vm264, %v263, 0.0
      %v267 = vsel %vm265, %v262, 0.0
      %v268 = vpack.c.bf16 %v266, %v266
      %v269 = vpack.c.bf16 %v267, %v267
      %270 = vrot.lane.b32.xlu0 %v172, 1
      %v271 = vpop.permute.xlu0 %270
      %272 = vrot.lane.b32.xlu0 %v173, 1
      %v273 = vpop.permute.xlu0 %272
      %vm274 = vcmp.lt.s32.totalorder %v175, 1
      %v275 = vsel %vm274, %v271, %v273
      %v276 = vsel %vm274, %v273, %v271
      %v277 = vsel %vm225, %v276, 0.0
      %v278 = vsel %vm226, %v275, 0.0
      %v279 = vpack.c.bf16 %v277, %v277
      %v280 = vpack.c.bf16 %v278, %v278
      %v281 = vpack.c.bf16 %v172, %v172
      %v282 = vpack.c.bf16 %v173, %v173
      %283 = vrot.lane.b32.xlu0 %v172, 127
      %v284 = vpop.permute.xlu0 %283
      %285 = vrot.lane.b32.xlu0 %v173, 127
      %v286 = vpop.permute.xlu0 %285
      %vm287 = vcmp.lt.s32.totalorder %v175, 127
      %v288 = vsel %vm287, %v284, %v286
      %v289 = vsel %vm287, %v286, %v284
      %v290 = vsel %vm227, %v288, 0.0
      %v291 = vsel %vm228, %v289, 0.0
      %v292 = vpack.c.bf16 %v290, %v290
      %v293 = vpack.c.bf16 %v291, %v291
      %294 = vrot.lane.b32.xlu0 %v172, 113
      %v295 = vpop.permute.xlu0 %294
      %296 = vrot.lane.b32.xlu0 %v173, 113
      %v297 = vpop.permute.xlu0 %296
      %vm298 = vcmp.lt.s32.totalorder %v175, 113
      %v299 = vsel %vm298, %v295, %v297
      %v300 = vsel %vm298, %v297, %v295
      %vm301 = vmand %vm231, %vm225
      %vm302 = vmand %vm232, %vm226
      %v303 = vsel %vm301, %v299, 0.0
      %v304 = vsel %vm302, %v300, 0.0
      %v305 = vpack.c.bf16 %v303, %v303
      %v306 = vpack.c.bf16 %v304, %v304
      %307 = vrot.lane.b32.xlu0 %v172, 112
      %v308 = vpop.permute.xlu0 %307
      %309 = vrot.lane.b32.xlu0 %v173, 112
      %v310 = vpop.permute.xlu0 %309
      %vm311 = vcmp.lt.s32.totalorder %v175, 112
      %v312 = vsel %vm311, %v308, %v310
      %v313 = vsel %vm311, %v310, %v308
      %v314 = vsel %vm231, %v312, 0.0
      %v315 = vsel %vm232, %v313, 0.0
      %v316 = vpack.c.bf16 %v314, %v314
      %v317 = vpack.c.bf16 %v315, %v315
      %318 = vrot.lane.b32.xlu0 %v172, 111
      %v319 = vpop.permute.xlu0 %318
      %320 = vrot.lane.b32.xlu0 %v173, 111
      %v321 = vpop.permute.xlu0 %320
      %vm322 = vcmp.lt.s32.totalorder %v175, 111
      %v323 = vsel %vm322, %v319, %v321
      %v324 = vsel %vm322, %v321, %v319
      %vm325 = vmand %vm231, %vm227
      %vm326 = vmand %vm232, %vm228
      %v327 = vsel %vm325, %v323, 0.0
      %v328 = vsel %vm326, %v324, 0.0
      %v329 = vpack.c.bf16 %v327, %v327
      %v330 = vpack.c.bf16 %v328, %v328
      %v333 = vrot.slane %v255, 4
      %v334 = vrot.slane %v256, 4
      %v337 = vrot.slane %v279, 4
      %v338 = vrot.slane %v280, 4
      %v341 = vrot.slane %v292, 4
      %v342 = vrot.slane %v293, 4
      %v345 = vrot.slane %v316, 4
      %v346 = vrot.slane %v317, 4
      %vm347 = vcmask 1043456
      %v350 = vsel %vm347, %v244, %v333
      %v354 = vsel %vm347, %v245, %v334
      %v358 = vsel %vm347, %v268, %v337
      %v362 = vsel %vm347, %v269, %v338
      %v366 = vsel %vm347, %v281, %v341
      %v370 = vsel %vm347, %v282, %v342
      %v374 = vsel %vm347, %v305, %v345
      %v378 = vsel %vm347, %v306, %v346
      %v380 = vld [vmem:[%s1] sm:$0xf]
      %v381 = vld [vmem:[%s1 + $0x4] sm:$0xf]
      %v384 = vunpack.c.l.b16 %v380
      %v385 = vunpack.c.l.b16 %v381
      %v386 = vpack.c.b16 %v385, %v384
      %vm387 = vcmask 588800
      %v389 = vsel %vm387, %v386, 0
      %v392 = vsel %vm347, %v329, 0
      %v395 = vsel %vm347, %v330, 0
      %397 = vmatprep.subr.bf16.mxu0 0
      %398 = vmatpush1.bf16.msra.mxu0 0
      %399 = vmatprep.subr.bf16.mxu0 0
      %400 = vmatpush1.bf16.msra.mxu0 0
      %401 = vmatprep.subr.bf16.mxu0 0
      %402 = vmatpush1.bf16.msra.mxu0 0
      %403 = vmatprep.subr.bf16.mxu0 %v395
      %404 = vmatpush1.bf16.msra.mxu0 %v392
      %405 = vmatprep.subr.bf16.mxu0 %v378
      %406 = vmatpush1.bf16.msra.mxu0 %v374
      %407 = vmatprep.subr.bf16.mxu0 %v370
      %408 = vmatpush1.bf16.msra.mxu0 %v366
      %409 = vmatprep.subr.bf16.mxu0 %v362
      %410 = vmatpush1.bf16.msra.mxu0 %v358
      %411 = vmatprep.subr.bf16.mxu0 %v354
      %412 = vmatpush1.bf16.msra.mxu0 %v350
      %413 = vmatprep.subr.bf16.mxu0 0
      %414 = vmatpush2.bf16.msra.mxu0 0
      %415 = vmatprep.subr.bf16.mxu0 0
      %416 = vmatpush2.bf16.msra.mxu0 0
      %417 = vmatprep.subr.bf16.mxu0 0
      %418 = vmatpush2.bf16.msra.mxu0 0
      %419 = vmatprep.subr.bf16.mxu0 0
      %420 = vmatpush2.bf16.msra.mxu0 0
      %421 = vmatprep.subr.bf16.mxu0 0
      %422 = vmatpush2.bf16.msra.mxu0 0
      %423 = vmatprep.subr.bf16.mxu0 0
      %424 = vmatpush2.bf16.msra.mxu0 0
      %425 = vmatprep.subr.bf16.mxu0 0
      %426 = vmatpush2.bf16.msra.mxu0 0
      %427 = vmatprep.subr.bf16.mxu0 0
      %428 = vmatpush2.bf16.msra.mxu0 0
      %429 = vmatprep.mubr.bf16.mxu0 0
      %430 = vmatmul.mubr.bf16.gmra.mxu0 %v389
      %v431 = vpop.f32.mrf.mxu0
      %v432 = vadd.f32 0.0, %v431
      %v433 = vpop.f32.mrf.mxu0
      %v434 = vadd.f32 0.0, %v433
      %v435 = vpop.f32.mrf.mxu0
      %v436 = vadd.f32 0.0, %v435
      %v437 = vpop.f32.mrf.mxu0
      %v438 = vadd.f32 0.0, %v437
      %439 = vdwg.mxu0
      %v440 = vmul.f32 %v432, 0.5
      %v441 = vmul.f32 %v434, 0.5
      %v442 = vmul.f32 %v436, 0.5
      %v443 = vmul.f32 %v438, 0.5
      %v444 = vmul.f32 %v432, 0.70710677
      %v445 = vmul.f32 %v434, 0.70710677
      %v446 = vmul.f32 %v436, 0.70710677
      %v447 = vmul.f32 %v438, 0.70710677
      %v448 = verf.f32.pop %v444
      %v449 = verf.f32.pop %v445
      %v450 = verf.f32.pop %v446
      %v451 = verf.f32.pop %v447
      %v452 = vadd.f32 %v448, 1.0
      %v453 = vadd.f32 %v449, 1.0
      %v454 = vadd.f32 %v450, 1.0
      %v455 = vadd.f32 %v451, 1.0
      %v456 = vmul.f32 %v440, %v452
      %v457 = vmul.f32 %v441, %v453
      %v458 = vmul.f32 %v442, %v454
      %v459 = vmul.f32 %v443, %v455
      %v460 = vld [vmem:[%s2] sm:$0xf]
      %v461 = vpack.c.bf16 %v458, %v456
      %v462 = vpack.c.bf16 %v459, %v457
      %vm463 = vcmask 130048
      %v465 = vsel %vm463, %v460, 0
      %467 = vmatprep.subr.bf16.mxu0 0
      %468 = vmatpush1.bf16.msra.mxu0 0
      %469 = vmatprep.subr.bf16.mxu0 0
      %470 = vmatpush1.bf16.msra.mxu0 0
      %471 = vmatprep.subr.bf16.mxu0 0
      %472 = vmatpush1.bf16.msra.mxu0 0
      %473 = vmatprep.subr.bf16.mxu0 0
      %474 = vmatpush1.bf16.msra.mxu0 0
      %475 = vmatprep.subr.bf16.mxu0 0
      %476 = vmatpush1.bf16.msra.mxu0 0
      %477 = vmatprep.subr.bf16.mxu0 0
      %478 = vmatpush1.bf16.msra.mxu0 0
      %479 = vmatprep.subr.bf16.mxu0 0
      %480 = vmatpush1.bf16.msra.mxu0 0
      %481 = vmatprep.subr.bf16.mxu0 %v462
      %482 = vmatpush1.bf16.msra.mxu0 %v461
      %483 = vmatprep.subr.bf16.mxu0 0
      %484 = vmatpush2.bf16.msra.mxu0 0
      %485 = vmatprep.subr.bf16.mxu0 0
      %486 = vmatpush2.bf16.msra.mxu0 0
      %487 = vmatprep.subr.bf16.mxu0 0
      %488 = vmatpush2.bf16.msra.mxu0 0
      %489 = vmatprep.subr.bf16.mxu0 0
      %490 = vmatpush2.bf16.msra.mxu0 0
      %491 = vmatprep.subr.bf16.mxu0 0
      %492 = vmatpush2.bf16.msra.mxu0 0
      %493 = vmatprep.subr.bf16.mxu0 0
      %494 = vmatpush2.bf16.msra.mxu0 0
      %495 = vmatprep.subr.bf16.mxu0 0
      %496 = vmatpush2.bf16.msra.mxu0 0
      %497 = vmatprep.subr.bf16.mxu0 0
      %498 = vmatpush2.bf16.msra.mxu0 0
      %499 = vmatprep.mubr.bf16.mxu0 0
      %500 = vmatmul.mubr.bf16.gmra.mxu0 %v465
      %v501 = vpop.f32.mrf.mxu0
      %v502 = vadd.f32 0.0, %v501
      %v503 = vpop.f32.mrf.mxu0
      %v504 = vadd.f32 0.0, %v503
      %v505 = vpop.f32.mrf.mxu0
      %v506 = vpop.f32.mrf.mxu0
      %507 = vdwg.mxu0
      %508 = vst [vmem:[%s170] sm:$0xff] %v502
      %509 = vst [vmem:[%s170 + $0x8] sm:$0xff] %v504
      %p510 = scmp.lt.s32.totalorder %s14, 1
      %s511 = scalar_select %p510, %s14, 1
      %s512 = smul.addr %s511, 2
      %s513 = smul.addr %s512, 8
      %s514 = scalar_lea.vmem %s3, %s513
      // Predicated region
      $region33: #{cfm_forward.1} parent=31 // pred_check
        %p515 = pneg %p100
      $region34: #{cfm_forward.1} parent=31 // pred_check_branch
        %517 = sbr.rel (%p515) target = $region36
      $region35: #{cfm_forward.1} parent=31 // pred_region
        _
      $region36: #{cfm_forward.1} parent=31 // pred_fallthru
        _
    $region32: #{cfm_forward.1} parent=5 // pred_fallthru
      _
    %p518 = scmp.le.s32.totalorder 2, %s9
    // Predicated region
    $region37: #{cfm_forward.1} parent=5 // pred_check
      %p519 = pneg %p518
    $region38: #{cfm_forward.1} parent=5 // pred_check_branch
      %521 = sbr.rel (%p519) target = $region40
    $region39: #{cfm_forward.1} parent=5 // pred_region
      %s522 = ssub.s32 %s9, 2
      // Predicated region
      $region41: #{cfm_forward.1} parent=39 // pred_check
        %p523 = pneg %p106
      $region42: #{cfm_forward.1} parent=39 // pred_check_branch
        %525 = sbr.rel (%p523) target = $region44
      $region43: #{cfm_forward.1} parent=39 // pred_region
        %p526 = scmp.lt.s32.totalorder %s15, 1
        %s527 = scalar_select %p526, %s15, 1
        %s528 = smul.addr %s527, 2
        %s529 = smul.addr %s528, 8
        %s530 = scalar_lea.vmem %s3, %s529
      $region44: #{cfm_forward.1} parent=39 // pred_fallthru
        _
    $region40: #{cfm_forward.1} parent=5 // pred_fallthru
      _
  $region6: #{cfm_forward.1} parent=0 // loop_footer
    %s13 = sadd.s32 1, %s9
  $region7: #{cfm_forward.1} parent=0 // loop_footer_branch
    %8 = sbr.rel target = $region3
  $region8: #{cfm_forward.1} parent=0 // loop_exit
    _

</llo_original>
